<compile_context>
chip_gen: v5e
topology: v5e:2x2
jax: 0.10.0
libtpu: 0.0.40
codegen_flags: <defaults>
</compile_context>

<pallas_src>
import functools

import jax
import jax.numpy as jnp
from jax import lax
from jax.experimental import pallas as pl
from jax.experimental.pallas import tpu as pltpu


def _quantizer_kernel(x_ref, w_ref, wt_ref, w2_ref, q_ref, ind_ref, dsum_ref,
                      *, m_total):
    # x_ref  : (E, TN)    channel-major input tile (lane axis = spatial)
    # w_ref  : (E, K)     codebook (resident across grid steps)
    # wt_ref : (K, E)     codebook transposed (resident)
    # w2_ref : (K, 1)     per-code squared norms (precomputed once in wrapper)
    # q_ref  : (E, TN)    straight-through quantized output tile
    # ind_ref: (1, TN)    nearest-code index per position (int32)
    # dsum_ref:(1, 1, 128) per-tile sum of squared quantization error
    n_embed = wt_ref.shape[0]
    tn = x_ref.shape[-1]

    x = x_ref[...]                                   # native dtype into the MXU
    scores = jnp.dot(wt_ref[...], x,
                     preferred_element_type=jnp.float32)        # (K, TN) f32

    # Squared distance without the per-position ||x||^2 term (constant over K,
    # so the argmin is identical — skip the reduction entirely).
    dist = w2_ref[...] - 2.0 * scores                            # (K, TN) f32

    kidx = lax.broadcasted_iota(jnp.int32, dist.shape, 0)        # (K, TN)
    min_d = jnp.min(dist, axis=0, keepdims=True)                 # (1, TN)
    cand = jnp.where(dist <= min_d, kidx.astype(jnp.float32),
                     jnp.float32(n_embed))
    ind = jnp.min(cand, axis=0, keepdims=True).astype(jnp.int32)  # (1, TN) first argmin

    onehot = (kidx == ind).astype(w_ref.dtype)                   # (K, TN)
    code = jnp.dot(w_ref[...], onehot,
                   preferred_element_type=jnp.float32)           # (E, TN) f32

    x_f32 = x.astype(jnp.float32)
    err = code - x_f32                                           # (E, TN)

    # Masked squared-error sum: the last tile along M may be a padded partial
    # block — mask it here instead of materializing a padded input in HBM.
    j = pl.program_id(1)
    lane = lax.broadcasted_iota(jnp.int32, (1, tn), 1)
    valid = (lane + j * tn) < m_total
    part = jnp.sum(jnp.where(valid, err * err, 0.0))

    q_ref[...] = (x_f32 + err).astype(q_ref.dtype)   # straight-through: x + (code - x)
    ind_ref[...] = ind
    dsum_ref[...] = jnp.broadcast_to(part, dsum_ref.shape).astype(jnp.float32)


def quantizer_forward(x_ncdhw, embed, *, tn=1024):
    """Eval-mode forward of the VQ Quantizer.

    x_ncdhw : (B, C, D, H, W) with C == dim (channel-major encoder output).
    embed   : (dim, n_embed) codebook.

    Returns (quantize, diff, embed_ind):
      quantize : (B, C, D, H, W)  straight-through quantized tensor
      diff     : f32 scalar       mean squared quantization error
      embed_ind: (B, D, H, W) i32 nearest-code index per position
    """
    B, C, D, H, W = x_ncdhw.shape
    E, K = embed.shape
    assert C == E, "channel dim must equal codebook dim"
    M = D * H * W

    # Channel-major -> (B, E, M): pure reshape, no transpose / extra HBM pass.
    x3 = x_ncdhw.reshape(B, E, M)

    # Lane tile along M: multiple of 128 when possible, no input padding.
    if M >= 128:
        tn_eff = max(128, min(tn, (M // 128) * 128))
    else:
        tn_eff = M
    nj = pl.cdiv(M, tn_eff)

    # Hoisted once per call (not per grid step / per core).
    w2 = jnp.sum(embed.astype(jnp.float32) ** 2, axis=0).reshape(K, 1)
    wt = jnp.swapaxes(embed, 0, 1)                                # (K, E), tiny

    kernel = functools.partial(_quantizer_kernel, m_total=M)

    q3, ind3, parts = pl.pallas_call(
        kernel,
        out_shape=(
            jax.ShapeDtypeStruct((B, E, M), x_ncdhw.dtype),       # quantize
            jax.ShapeDtypeStruct((B, 1, M), jnp.int32),           # indices
            jax.ShapeDtypeStruct((B, nj, 1, 128), jnp.float32),   # sq-err partials
        ),
        grid_spec=pltpu.PrefetchScalarGridSpec(
            num_scalar_prefetch=0,
            grid=(B, nj),
            in_specs=[
                pl.BlockSpec((None, E, tn_eff), lambda b, j: (b, 0, j)),
                pl.BlockSpec((E, K), lambda b, j: (0, 0)),
                pl.BlockSpec((K, E), lambda b, j: (0, 0)),
                pl.BlockSpec((K, 1), lambda b, j: (0, 0)),
            ],
            out_specs=[
                pl.BlockSpec((None, E, tn_eff), lambda b, j: (b, 0, j)),
                pl.BlockSpec((None, 1, tn_eff), lambda b, j: (b, 0, j)),
                pl.BlockSpec((None, 1, 1, 128), lambda b, j: (b, j, 0, 0)),
            ],
        ),
        compiler_params=pltpu.CompilerParams(
            dimension_semantics=("parallel", "parallel")),
    )(x3, embed, wt, w2)

    quantize = q3.reshape(B, C, D, H, W)
    embed_ind = ind3.reshape(B, D, H, W)
    diff = jnp.sum(parts[:, :, 0, 0]) / jnp.float32(B * M * E)
    # TODO(synk): training-time EMA buffer updates (cluster_size, embed_avg,
    # embed re-normalization) are stateful training-only side effects and are
    # intentionally not part of this eval forward kernel.
    return quantize, diff, embed_ind


def _reference(x_ncdhw, embed):
    """Pure-JAX mirror of the PyTorch Quantizer.forward (eval mode)."""
    B, C, D, H, W = x_ncdhw.shape
    inp = jnp.transpose(x_ncdhw, (0, 2, 3, 4, 1))       # channels-last view the module sees
    flatten = inp.reshape(-1, C)
    dist = (jnp.sum(flatten ** 2, axis=1, keepdims=True)
            - 2.0 * (flatten @ embed)
            + jnp.sum(embed ** 2, axis=0, keepdims=True))
    embed_ind = jnp.argmin(dist, axis=1)                # == (-dist).max(1).indices
    quantize = jnp.take(embed.T, embed_ind, axis=0).reshape(inp.shape)
    diff = jnp.mean((quantize - inp) ** 2)
    q_st = inp + (quantize - inp)                       # straight-through forward value
    return (jnp.transpose(q_st, (0, 4, 1, 2, 3)),
            diff,
            embed_ind.reshape(B, D, H, W))


if __name__ == "__main__":
    dim, n_embed = 4, 32
    B, D, H, W = 2, 8, 8, 8

    key = jax.random.PRNGKey(0)
    kx, kw = jax.random.split(key)
    x = jax.random.normal(kx, (B, dim, D, H, W), dtype=jnp.float32)
    # Quantizer buffer init: embed = torch.randn(dim, n_embed)
    embed = jax.random.normal(kw, (dim, n_embed), dtype=jnp.float32)

    quantize, diff, embed_ind = quantizer_forward(x, embed)
    quantize, diff, embed_ind = jax.block_until_ready((quantize, diff, embed_ind))

    q_ref, d_ref, i_ref = _reference(x, embed)
    assert quantize.shape == x.shape
    assert embed_ind.shape == (B, D, H, W)
    assert jnp.allclose(quantize, q_ref, atol=1e-5, rtol=1e-5), "quantize mismatch"
    assert jnp.allclose(diff, d_ref, atol=1e-4, rtol=1e-4), "diff mismatch"
    assert jnp.array_equal(embed_ind, i_ref.astype(embed_ind.dtype)), "index mismatch"

    print("KERNEL_OK")
</pallas_src>

<mosaic_0001>
module attributes {stable_mosaic.version = 11 : i64} {
  func.func @_quantizer_kernel(%arg0: i32, %arg1: i32, %arg2: memref<1x4x512xf32, #tpu.memory_space<vmem>>, %arg3: memref<4x32xf32, #tpu.memory_space<vmem>>, %arg4: memref<32x4xf32, #tpu.memory_space<vmem>>, %arg5: memref<32x1xf32, #tpu.memory_space<vmem>>, %arg6: memref<1x4x512xf32, #tpu.memory_space<vmem>>, %arg7: memref<1x1x512xi32, #tpu.memory_space<vmem>>, %arg8: memref<1x1x1x128xf32, #tpu.memory_space<vmem>>) attributes {dimension_semantics = [#tpu.dimension_semantics<parallel>, #tpu.dimension_semantics<parallel>], iteration_bounds = array<i64: 2, 1>, scalar_prefetch = 0 : i64, scratch_operands = 0 : i64, tpu.core_type = #tpu.core_type<tc>, window_params = [{transform_indices = @transform_0, window_bounds = array<i64: 1, 4, 512>}, {pipeline_mode = #tpu.pipeline_mode<synchronous>, transform_indices = @transform_1, window_bounds = array<i64: 4, 32>}, {pipeline_mode = #tpu.pipeline_mode<synchronous>, transform_indices = @transform_2, window_bounds = array<i64: 32, 4>}, {pipeline_mode = #tpu.pipeline_mode<synchronous>, transform_indices = @transform_3, window_bounds = array<i64: 32, 1>}, {transform_indices = @transform_4, window_bounds = array<i64: 1, 4, 512>}, {transform_indices = @transform_5, window_bounds = array<i64: 1, 1, 512>}, {transform_indices = @transform_6, window_bounds = array<i64: 1, 1, 1, 128>}]} {
    %c0 = arith.constant 0 : index
    %c0_0 = arith.constant 0 : index
    %c0_1 = arith.constant 0 : index
    %0 = vector.load %arg2[%c0, %c0_0, %c0_1] : memref<1x4x512xf32, #tpu.memory_space<vmem>>, vector<1x4x512xf32>
    %1 = vector.shape_cast %0 : vector<1x4x512xf32> to vector<4x512xf32>
    %c0_2 = arith.constant 0 : index
    %c0_3 = arith.constant 0 : index
    %2 = vector.load %arg4[%c0_2, %c0_3] : memref<32x4xf32, #tpu.memory_space<vmem>>, vector<32x4xf32>
    %cst = arith.constant dense<0.000000e+00> : vector<32x512xf32>
    %3 = tpu.matmul %2, %1, %cst {dimension_numbers = #tpu.dot_dimension_numbers<[1], [0], [0], [1], [0, 0, 1, 1], [], []>} : vector<32x4xf32>, vector<4x512xf32>, vector<32x512xf32> -> vector<32x512xf32>
    %c0_4 = arith.constant 0 : index
    %c0_5 = arith.constant 0 : index
    %4 = vector.load %arg5[%c0_4, %c0_5] : memref<32x1xf32, #tpu.memory_space<vmem>>, vector<32x1xf32>
    %cst_6 = arith.constant 2.000000e+00 : f32
    %5 = vector.broadcast %cst_6 : f32 to vector<32x512xf32>
    %6 = arith.mulf %5, %3 : vector<32x512xf32>
    %7 = vector.broadcast %4 : vector<32x1xf32> to vector<32x512xf32>
    %8 = arith.subf %7, %6 : vector<32x512xf32>
    %9 = tpu.iota {dimensions = array<i32: 0>} : vector<32x512xi32>
    %cst_7 = arith.constant dense<0x7F800000> : vector<512xf32>
    %10 = vector.multi_reduction <minimumf>, %8, %cst_7 [0] : vector<32x512xf32> to vector<512xf32>
    %11 = vector.shape_cast %10 : vector<512xf32> to vector<1x512xf32>
    %12 = vector.broadcast %11 : vector<1x512xf32> to vector<32x512xf32>
    %13 = arith.cmpf ole, %8, %12 : vector<32x512xf32>
    %14 = arith.sitofp %9 : vector<32x512xi32> to vector<32x512xf32>
    %cst_8 = arith.constant 3.200000e+01 : f32
    %15 = vector.broadcast %cst_8 : f32 to vector<32x512xf32>
    %16 = arith.select %13, %14, %15 : vector<32x512xi1>, vector<32x512xf32>
    %cst_9 = arith.constant dense<0x7F800000> : vector<512xf32>
    %17 = vector.multi_reduction <minimumf>, %16, %cst_9 [0] : vector<32x512xf32> to vector<512xf32>
    %18 = vector.shape_cast %17 : vector<512xf32> to vector<1x512xf32>
    %19 = arith.fptosi %18 : vector<1x512xf32> to vector<1x512xi32>
    %20 = vector.broadcast %19 : vector<1x512xi32> to vector<32x512xi32>
    %21 = arith.cmpi eq, %9, %20 : vector<32x512xi32>
    %22 = arith.extui %21 : vector<32x512xi1> to vector<32x512xi32>
    %23 = arith.sitofp %22 : vector<32x512xi32> to vector<32x512xf32>
    %c0_10 = arith.constant 0 : index
    %c0_11 = arith.constant 0 : index
    %24 = vector.load %arg3[%c0_10, %c0_11] : memref<4x32xf32, #tpu.memory_space<vmem>>, vector<4x32xf32>
    %cst_12 = arith.constant dense<0.000000e+00> : vector<4x512xf32>
    %25 = tpu.matmul %24, %23, %cst_12 {dimension_numbers = #tpu.dot_dimension_numbers<[1], [0], [0], [1], [0, 0, 1, 1], [], []>} : vector<4x32xf32>, vector<32x512xf32>, vector<4x512xf32> -> vector<4x512xf32>
    %26 = arith.subf %25, %1 : vector<4x512xf32>
    %27 = tpu.iota {dimensions = array<i32: 1>} : vector<1x512xi32>
    %c512_i32 = arith.constant 512 : i32
    %28 = arith.muli %arg1, %c512_i32 : i32
    %29 = vector.broadcast %28 : i32 to vector<1x512xi32>
    %30 = arith.addi %27, %29 : vector<1x512xi32>
    %c512_i32_13 = arith.constant 512 : i32
    %31 = vector.broadcast %c512_i32_13 : i32 to vector<1x512xi32>
    %32 = arith.cmpi slt, %30, %31 : vector<1x512xi32>
    %33 = arith.mulf %26, %26 : vector<4x512xf32>
    %cst_14 = arith.constant 0.000000e+00 : f32
    %34 = vector.shape_cast %32 : vector<1x512xi1> to vector<1x512xi1>
    %35 = vector.broadcast %34 : vector<1x512xi1> to vector<4x512xi1>
    %36 = vector.broadcast %cst_14 : f32 to vector<4x512xf32>
    %37 = arith.select %35, %33, %36 : vector<4x512xi1>, vector<4x512xf32>
    %38 = vector.shape_cast %37 : vector<4x512xf32> to vector<1x4x512xf32>
    %cst_15 = arith.constant dense<0.000000e+00> : vector<1xf32>
    %39 = vector.multi_reduction <add>, %38, %cst_15 [1, 2] : vector<1x4x512xf32> to vector<1xf32>
    %40 = vector.shape_cast %39 : vector<1xf32> to vector<1x1x1xf32>
    %41 = vector.extract %40[0, 0, 0] : f32 from vector<1x1x1xf32>
    %42 = arith.addf %1, %26 : vector<4x512xf32>
    %c0_16 = arith.constant 0 : index
    %c0_17 = arith.constant 0 : index
    %c0_18 = arith.constant 0 : index
    %43 = vector.load %arg6[%c0_16, %c0_17, %c0_18] : memref<1x4x512xf32, #tpu.memory_space<vmem>>, vector<1x4x512xf32>
    %44 = vector.shape_cast %43 : vector<1x4x512xf32> to vector<4x512xf32>
    %45 = vector.shape_cast %42 : vector<4x512xf32> to vector<1x4x512xf32>
    tpu.vector_store %arg6[%c0_16, %c0_17, %c0_18], %45 {strides = array<i32>} : memref<1x4x512xf32, #tpu.memory_space<vmem>>, vector<1x4x512xf32>,
    %c0_19 = arith.constant 0 : index
    %c0_20 = arith.constant 0 : index
    %c0_21 = arith.constant 0 : index
    %46 = vector.load %arg7[%c0_19, %c0_20, %c0_21] : memref<1x1x512xi32, #tpu.memory_space<vmem>>, vector<1x1x512xi32>
    %47 = vector.shape_cast %46 : vector<1x1x512xi32> to vector<1x512xi32>
    %48 = vector.shape_cast %19 : vector<1x512xi32> to vector<1x1x512xi32>
    tpu.vector_store %arg7[%c0_19, %c0_20, %c0_21], %48 {strides = array<i32>} : memref<1x1x512xi32, #tpu.memory_space<vmem>>, vector<1x1x512xi32>,
    %49 = vector.broadcast %41 : f32 to vector<1x1x128xf32>
    %c0_22 = arith.constant 0 : index
    %c0_23 = arith.constant 0 : index
    %c0_24 = arith.constant 0 : index
    %c0_25 = arith.constant 0 : index
    %50 = vector.load %arg8[%c0_22, %c0_23, %c0_24, %c0_25] : memref<1x1x1x128xf32, #tpu.memory_space<vmem>>, vector<1x1x1x128xf32>
    %51 = vector.shape_cast %50 : vector<1x1x1x128xf32> to vector<1x1x128xf32>
    %52 = vector.shape_cast %49 : vector<1x1x128xf32> to vector<1x1x1x128xf32>
    tpu.vector_store %arg8[%c0_22, %c0_23, %c0_24, %c0_25], %52 {strides = array<i32>} : memref<1x1x1x128xf32, #tpu.memory_space<vmem>>, vector<1x1x1x128xf32>,
    return
  }
  func.func @transform_0(%arg0: i32, %arg1: i32) -> (i32, i32, i32) {
    %c0_i32 = arith.constant 0 : i32
    %c0_i32_0 = arith.constant 0 : i32
    return %arg0, %c0_i32, %arg1 : i32, i32, i32
  }
  func.func @transform_1(%arg0: i32, %arg1: i32) -> (i32, i32) {
    %c0_i32 = arith.constant 0 : i32
    %c0_i32_0 = arith.constant 0 : i32
    %c0_i32_1 = arith.constant 0 : i32
    return %c0_i32, %c0_i32_0 : i32, i32
  }
  func.func @transform_2(%arg0: i32, %arg1: i32) -> (i32, i32) {
    %c0_i32 = arith.constant 0 : i32
    %c0_i32_0 = arith.constant 0 : i32
    %c0_i32_1 = arith.constant 0 : i32
    return %c0_i32, %c0_i32_0 : i32, i32
  }
  func.func @transform_3(%arg0: i32, %arg1: i32) -> (i32, i32) {
    %c0_i32 = arith.constant 0 : i32
    %c0_i32_0 = arith.constant 0 : i32
    %c0_i32_1 = arith.constant 0 : i32
    return %c0_i32, %c0_i32_0 : i32, i32
  }
  func.func @transform_4(%arg0: i32, %arg1: i32) -> (i32, i32, i32) {
    %c0_i32 = arith.constant 0 : i32
    %c0_i32_0 = arith.constant 0 : i32
    return %arg0, %c0_i32, %arg1 : i32, i32, i32
  }
  func.func @transform_5(%arg0: i32, %arg1: i32) -> (i32, i32, i32) {
    %c0_i32 = arith.constant 0 : i32
    %c0_i32_0 = arith.constant 0 : i32
    return %arg0, %c0_i32, %arg1 : i32, i32, i32
  }
  func.func @transform_6(%arg0: i32, %arg1: i32) -> (i32, i32, i32, i32) {
    %c0_i32 = arith.constant 0 : i32
    %c0_i32_0 = arith.constant 0 : i32
    %c0_i32_1 = arith.constant 0 : i32
    return %arg0, %arg1, %c0_i32, %c0_i32_0 : i32, i32, i32, i32
  }
}

</mosaic_0001>

<llo_original>
// kernel: tpu_custom_call.1
$region0: #{tpu_custom_call.1}
  #allocation0 [shape = 'u32[]', space=smem, size = 0x4, offset = 0x4, fixed_abs, tag = 'smem constant byte address 0x4 - core index']
  #allocation1 [shape = 'u32[72,128]{1,0:T(1,128)}', space=vmem, size = 0x9000, scoped, tag = 'internal scratch']
  %s0 = inlined_call_operand.vmem [shape: f32[2,4,512], index: 0, kind: input, shape index: {}]
  %s1 = inlined_call_operand.vmem [shape: f32[4,32], index: 1, kind: input, shape index: {}]
  %s2 = inlined_call_operand.vmem [shape: f32[32,4], index: 2, kind: input, shape index: {}]
  %s3 = inlined_call_operand.vmem [shape: f32[32,1], index: 3, kind: input, shape index: {}]
  %s4 = inlined_call_operand.hbm [shape: f32[2,4,512], index: 4, kind: output, shape index: {0}]
  %s5 = inlined_call_operand.hbm [shape: s32[2,1,512], index: 5, kind: output, shape index: {1}]
  %s6 = inlined_call_operand.hbm [shape: f32[2,1,1,128], index: 6, kind: output, shape index: {2}]
  %7 = xla_tuple %s4, %s5, %s6
  %s8 = sld [smem:[#allocation0]]
  $region65: #{tpu_custom_call.1} parent=0
    _
  %s10 = ssub.s32 1, %s8
  %s11 = scalar_select 0, %s10, %s8
  $region1: #{tpu_custom_call.1} parent=0
    #allocation2 [shape = 'u8[16384]{0}', space=vmem, size = 0x4000, scoped, tag = 'output window, operand 0']
    #allocation3 [shape = 's32[2]{0}', space=sflag, size = 0x8, scoped, tag = 'scoped memory for tpu_custom_call.1']
    #allocation4 [shape = 'u8[4096]{0}', space=vmem, size = 0x1000, scoped, tag = 'output window, operand 1']
    #allocation5 [shape = 's32[2]{0}', space=sflag, size = 0x8, scoped, tag = 'scoped memory for tpu_custom_call.1']
    #allocation6 [shape = 'u8[1024]{0}', space=vmem, size = 0x400, scoped, tag = 'output window, operand 2']
    %12 = vsyncpa [#allocation3], 0
    %s13 = scalar_lea.sflag [#allocation3], 1
    %14 = vsyncpa %s13, 0
    %15 = vsyncpa [#allocation5], 0
    %s16 = scalar_lea.sflag [#allocation5], 1
    %17 = vsyncpa %s16, 0
    loop: start=0, step=1, limit=4
    $region2: #{tpu_custom_call.1} parent=1 // loop_pre_header
      _
    $region3: #{tpu_custom_call.1} parent=1 // loop_header
      %s19 = sphi 0, %s23
      %p20 = scmp.ge.s32.totalorder %s19, 4
      %s26 = sphi 0, %s38
      %s27 = sphi 0, %s34
      %s28 = sphi 0, %s26
      %s29 = sphi 0, %s27
      %s30 = sphi 0, %s28
      %s31 = sphi 0, %s29
      %s43 = sphi 0, %s45
      %s46 = sphi 0, %s43
      %s47 = sphi 0, %s46
      %s63 = sphi 0, %s47
      %s67 = sphi 0, %s67
      %s69 = sphi 0, %s67
      %s70 = sphi 0, %s69
      %s84 = sphi 0, %s70
      %s88 = sphi 0, %s88
      %s90 = sphi 0, %s88
      %s91 = sphi 0, %s90
      %s105 = sphi 0, %s91
      %s109 = sphi 0, %s109
      %s111 = sphi 0, %s109
      %s112 = sphi 0, %s111
      %s126 = sphi 0, %s112
      %s134 = sphi 0, %s136
      %s137 = sphi 0, %s134
      %s138 = sphi 0, %s137
      %s154 = sphi 0, %s138
      %s162 = sphi 0, %s164
      %s165 = sphi 0, %s162
      %s166 = sphi 0, %s165
      %s182 = sphi 0, %s166
      %s190 = sphi 0, %s192
      %s193 = sphi 0, %s190
      %s194 = sphi 0, %s193
      %s210 = sphi 0, %s194
    $region4: #{tpu_custom_call.1} parent=1 // loop_header_branch
      %22 = sbr.rel (%p20) target = $region8
    $region5: #{tpu_custom_call.1} parent=1 // loop_body
      %s24 = ssub.s32 %s19, 1
      %s25 = ssub.s32 %s19, 2
      %s32 = sadd.s32 1, %s27
      %p33 = scmp.ge.s32.totalorder %s32, 1
      %s34 = scalar_select %p33, 0, %s32
      %s35 = sadd.s32 1, %s26
      %s36 = scalar_select %p33, %s35, %s26
      %p37 = scmp.ge.s32.totalorder %s36, 2
      %s38 = scalar_select %p37, 0, %s36
      %s39 = ssub.s32 %s26, %s38
      %s40 = ssub.s32 %s27, %s34
      %s41 = sor.u32 %s39, %s40
      %p42 = scmp.eq.s32.totalorder %s41, 0
      %s44 = sadd.s32 %s43, 1
      %s45 = scalar_select %p42, %s43, %s44
      %p48 = pneg %p42
      %p49 = scmp.eq.s32.totalorder %s19, 1
      %p50 = por %p48, %p49
      %p51 = scmp.ne.s32.totalorder %s43, %s46
      %p52 = scmp.eq.s32.totalorder %s19, 0
      %p53 = por %p51, %p52
      %p54 = scmp.ne.s32.totalorder %s43, %s46
      %p55 = scmp.eq.s32.totalorder %s24, 1
      %p56 = por %p54, %p55
      %p57 = scmp.ne.s32.totalorder %s46, %s47
      %p58 = scmp.eq.s32.totalorder %s24, 0
      %p59 = por %p57, %p58
      %p60 = scmp.ne.s32.totalorder %s46, %s47
      %p61 = scmp.eq.s32.totalorder %s25, 1
      %p62 = por %p60, %p61
      %p64 = scmp.ne.s32.totalorder %s47, %s63
      %p65 = scmp.eq.s32.totalorder %s25, 0
      %p66 = por %p64, %p65
      %s68 = sadd.s32 %s67, 1
      %p71 = scmp.eq.s32.totalorder %s19, 1
      %p72 = scmp.ne.s32.totalorder %s67, %s69
      %p73 = scmp.eq.s32.totalorder %s19, 0
      %p74 = por %p72, %p73
      %p75 = scmp.ne.s32.totalorder %s67, %s69
      %p76 = scmp.eq.s32.totalorder %s24, 1
      %p77 = por %p75, %p76
      %p78 = scmp.ne.s32.totalorder %s69, %s70
      %p79 = scmp.eq.s32.totalorder %s24, 0
      %p80 = por %p78, %p79
      %p81 = scmp.ne.s32.totalorder %s69, %s70
      %p82 = scmp.eq.s32.totalorder %s25, 1
      %p83 = por %p81, %p82
      %p85 = scmp.ne.s32.totalorder %s70, %s84
      %p86 = scmp.eq.s32.totalorder %s25, 0
      %p87 = por %p85, %p86
      %s89 = sadd.s32 %s88, 1
      %p92 = scmp.eq.s32.totalorder %s19, 1
      %p93 = scmp.ne.s32.totalorder %s88, %s90
      %p94 = scmp.eq.s32.totalorder %s19, 0
      %p95 = por %p93, %p94
      %p96 = scmp.ne.s32.totalorder %s88, %s90
      %p97 = scmp.eq.s32.totalorder %s24, 1
      %p98 = por %p96, %p97
      %p99 = scmp.ne.s32.totalorder %s90, %s91
      %p100 = scmp.eq.s32.totalorder %s24, 0
      %p101 = por %p99, %p100
      %p102 = scmp.ne.s32.totalorder %s90, %s91
      %p103 = scmp.eq.s32.totalorder %s25, 1
      %p104 = por %p102, %p103
      %p106 = scmp.ne.s32.totalorder %s91, %s105
      %p107 = scmp.eq.s32.totalorder %s25, 0
      %p108 = por %p106, %p107
      %s110 = sadd.s32 %s109, 1
      %p113 = scmp.eq.s32.totalorder %s19, 1
      %p114 = scmp.ne.s32.totalorder %s109, %s111
      %p115 = scmp.eq.s32.totalorder %s19, 0
      %p116 = por %p114, %p115
      %p117 = scmp.ne.s32.totalorder %s109, %s111
      %p118 = scmp.eq.s32.totalorder %s24, 1
      %p119 = por %p117, %p118
      %p120 = scmp.ne.s32.totalorder %s111, %s112
      %p121 = scmp.eq.s32.totalorder %s24, 0
      %p122 = por %p120, %p121
      %p123 = scmp.ne.s32.totalorder %s111, %s112
      %p124 = scmp.eq.s32.totalorder %s25, 1
      %p125 = por %p123, %p124
      %p127 = scmp.ne.s32.totalorder %s112, %s126
      %p128 = scmp.eq.s32.totalorder %s25, 0
      %p129 = por %p127, %p128
      %s130 = ssub.s32 %s26, %s38
      %s131 = ssub.s32 %s27, %s34
      %s132 = sor.u32 %s130, %s131
      %p133 = scmp.eq.s32.totalorder %s132, 0
      %s135 = sadd.s32 %s134, 1
      %s136 = scalar_select %p133, %s134, %s135
      %p139 = pneg %p133
      %p140 = scmp.eq.s32.totalorder %s19, 1
      %p141 = por %p139, %p140
      %p142 = scmp.ne.s32.totalorder %s134, %s137
      %p143 = scmp.eq.s32.totalorder %s19, 0
      %p144 = por %p142, %p143
      %p145 = scmp.ne.s32.totalorder %s134, %s137
      %p146 = scmp.eq.s32.totalorder %s24, 1
      %p147 = por %p145, %p146
      %p148 = scmp.ne.s32.totalorder %s137, %s138
      %p149 = scmp.eq.s32.totalorder %s24, 0
      %p150 = por %p148, %p149
      %p151 = scmp.ne.s32.totalorder %s137, %s138
      %p152 = scmp.eq.s32.totalorder %s25, 1
      %p153 = por %p151, %p152
      %p155 = scmp.ne.s32.totalorder %s138, %s154
      %p156 = scmp.eq.s32.totalorder %s25, 0
      %p157 = por %p155, %p156
      %s158 = ssub.s32 %s26, %s38
      %s159 = ssub.s32 %s27, %s34
      %s160 = sor.u32 %s158, %s159
      %p161 = scmp.eq.s32.totalorder %s160, 0
      %s163 = sadd.s32 %s162, 1
      %s164 = scalar_select %p161, %s162, %s163
      %p167 = pneg %p161
      %p168 = scmp.eq.s32.totalorder %s19, 1
      %p169 = por %p167, %p168
      %p170 = scmp.ne.s32.totalorder %s162, %s165
      %p171 = scmp.eq.s32.totalorder %s19, 0
      %p172 = por %p170, %p171
      %p173 = scmp.ne.s32.totalorder %s162, %s165
      %p174 = scmp.eq.s32.totalorder %s24, 1
      %p175 = por %p173, %p174
      %p176 = scmp.ne.s32.totalorder %s165, %s166
      %p177 = scmp.eq.s32.totalorder %s24, 0
      %p178 = por %p176, %p177
      %p179 = scmp.ne.s32.totalorder %s165, %s166
      %p180 = scmp.eq.s32.totalorder %s25, 1
      %p181 = por %p179, %p180
      %p183 = scmp.ne.s32.totalorder %s166, %s182
      %p184 = scmp.eq.s32.totalorder %s25, 0
      %p185 = por %p183, %p184
      %s186 = ssub.s32 %s26, %s38
      %s187 = ssub.s32 %s27, %s34
      %s188 = sor.u32 %s186, %s187
      %p189 = scmp.eq.s32.totalorder %s188, 0
      %s191 = sadd.s32 %s190, 1
      %s192 = scalar_select %p189, %s190, %s191
      %p195 = pneg %p189
      %p196 = scmp.eq.s32.totalorder %s19, 1
      %p197 = por %p195, %p196
      %p198 = scmp.ne.s32.totalorder %s190, %s193
      %p199 = scmp.eq.s32.totalorder %s19, 0
      %p200 = por %p198, %p199
      %p201 = scmp.ne.s32.totalorder %s190, %s193
      %p202 = scmp.eq.s32.totalorder %s24, 1
      %p203 = por %p201, %p202
      %p204 = scmp.ne.s32.totalorder %s193, %s194
      %p205 = scmp.eq.s32.totalorder %s24, 0
      %p206 = por %p204, %p205
      %p207 = scmp.ne.s32.totalorder %s193, %s194
      %p208 = scmp.eq.s32.totalorder %s25, 1
      %p209 = por %p207, %p208
      %p211 = scmp.ne.s32.totalorder %s194, %s210
      %p212 = scmp.eq.s32.totalorder %s25, 0
      %p213 = por %p211, %p212
      %p214 = scmp.le.s32.totalorder 1, %s19
      %p215 = scmp.lt.s32.totalorder %s19, 3
      %p216 = pnand %p214, %p215
      %p217 = pneg %p216
      // Predicated region
      $region9: #{tpu_custom_call.1} parent=5 // pred_check
        _
      $region10: #{tpu_custom_call.1} parent=5 // pred_check_branch
        %219 = sbr.rel (%p216) target = $region12
      $region11: #{tpu_custom_call.1} parent=5 // pred_region
        %s220 = ssub.s32 %s19, 1
        // Predicated region
        $region13: #{tpu_custom_call.1} parent=11 // pred_check
          %p221 = pneg %p80
        $region14: #{tpu_custom_call.1} parent=11 // pred_check_branch
          %223 = sbr.rel (%p221) target = $region16
        $region15: #{tpu_custom_call.1} parent=11 // pred_region
          _
        $region16: #{tpu_custom_call.1} parent=11 // pred_fallthru
          _
        // Predicated region
        $region17: #{tpu_custom_call.1} parent=11 // pred_check
          %p224 = pneg %p101
        $region18: #{tpu_custom_call.1} parent=11 // pred_check_branch
          %226 = sbr.rel (%p224) target = $region20
        $region19: #{tpu_custom_call.1} parent=11 // pred_region
          _
        $region20: #{tpu_custom_call.1} parent=11 // pred_fallthru
          _
        // Predicated region
        $region21: #{tpu_custom_call.1} parent=11 // pred_check
          %p227 = pneg %p122
        $region22: #{tpu_custom_call.1} parent=11 // pred_check_branch
          %229 = sbr.rel (%p227) target = $region24
        $region23: #{tpu_custom_call.1} parent=11 // pred_region
          _
        $region24: #{tpu_custom_call.1} parent=11 // pred_fallthru
          _
      $region12: #{tpu_custom_call.1} parent=5 // pred_fallthru
        _
      %p230 = scmp.lt.s32.totalorder %s19, 2
      // Predicated region
      $region25: #{tpu_custom_call.1} parent=5 // pred_check
        %p231 = pneg %p230
      $region26: #{tpu_custom_call.1} parent=5 // pred_check_branch
        %233 = sbr.rel (%p231) target = $region28
      $region27: #{tpu_custom_call.1} parent=5 // pred_region
        // Predicated region
        $region29: #{tpu_custom_call.1} parent=27 // pred_check
          %p234 = pneg %p53
        $region30: #{tpu_custom_call.1} parent=27 // pred_check_branch
          %236 = sbr.rel (%p234) target = $region32
        $region31: #{tpu_custom_call.1} parent=27 // pred_region
          %s237 = smul.u32 4, %s27
          %p238 = scmp.lt.s32.totalorder %s26, 1
          %s239 = scalar_select %p238, %s26, 1
          %p240 = scmp.lt.s32.totalorder %s237, 3
          %s241 = scalar_select %p240, %s237, 3
          %s242 = smul.addr %s239, 4
          %s243 = sadd.s32 %s241, %s242
          %s244 = smul.addr %s243, 4
          %s245 = scalar_lea.vmem %s0, %s244
          %s246 = smul.u32 4, %s27
        $region32: #{tpu_custom_call.1} parent=27 // pred_fallthru
          _
      $region28: #{tpu_custom_call.1} parent=5 // pred_fallthru
        _
      %p247 = scmp.le.s32.totalorder 1, %s19
      %p248 = scmp.lt.s32.totalorder %s19, 3
      %p249 = pnand %p247, %p248
      %p250 = pneg %p249
      // Predicated region
      $region33: #{tpu_custom_call.1} parent=5 // pred_check
        _
      $region34: #{tpu_custom_call.1} parent=5 // pred_check_branch
        %252 = sbr.rel (%p249) target = $region36
      $region35: #{tpu_custom_call.1} parent=5 // pred_region
        %s253 = ssub.s32 %s19, 1
        %s254 = smul.u32 4, %s29
        %p255 = scmp.lt.s32.totalorder %s28, 1
        %s256 = scalar_select %p255, %s28, 1
        %p257 = scmp.lt.s32.totalorder %s254, 3
        %s258 = scalar_select %p257, %s254, 3
        %s259 = smul.addr %s256, 4
        %s260 = sadd.s32 %s258, %s259
        %s261 = smul.addr %s260, 4
        %s262 = scalar_lea.vmem %s0, %s261
        %p263 = pneg %p59
        %p264 = pneg %p56
        %p265 = pneg %p80
        %p266 = pneg %p77
        %p267 = pneg %p101
        %p268 = pneg %p98
        %p269 = pneg %p122
        %p270 = pneg %p119
        %p271 = pneg %p150
        %p272 = pneg %p147
        %s273 = sand.u32 %s137, 1
        %s274 = scalar_lea.sflag [#allocation3], %s273
        %s275 = sand.u32 %s137, 1
        %s276 = smul.addr %s275, 16
        %s277 = scalar_lea.vmem [#allocation2], %s276
        %p278 = pneg %p178
        %p279 = pneg %p175
        %s280 = sand.u32 %s24, 1
        %s281 = scalar_lea.sflag [#allocation5], %s280
        %s282 = sand.u32 %s165, 1
        %s283 = smul.addr %s282, 4
        %s284 = scalar_lea.vmem [#allocation4], %s283
        %p285 = pneg %p206
        %p286 = pneg %p203
        %s287 = sand.u32 %s24, 1
        %s288 = scalar_lea.sflag [#allocation5], %s287
        %s289 = sand.u32 %s193, 1
        %s290 = scalar_lea.vmem [#allocation6], %s289
        %s291 = smul.u32 4, %s29
        %p292 = scmp.lt.s32.totalorder %s28, 1
        %s293 = scalar_select %p292, %s28, 1
        %p294 = scmp.lt.s32.totalorder %s291, 3
        %s295 = scalar_select %p294, %s291, 3
        %s296 = smul.addr %s293, 4
        %s297 = sadd.s32 %s295, %s296
        %s298 = smul.addr %s297, 4
        %s299 = scalar_lea.vmem %s0, %s298
        %s300 = smul.u32 4, %s29
        %s301 = smul.u32 4, %s29
        %s302 = smul.u32 4, %s29
        %v303 = vld [vmem:[%s299] sm:$0xff]
        %v304 = vld [vmem:[%s299 + $0x8] sm:$0xff]
        %v305 = vld [vmem:[%s2] sm:$0xff]
        %v306 = vld [vmem:[%s2 + $0x8] sm:$0xff]
        %v307 = vld [vmem:[%s2 + $0x10] sm:$0xff]
        %v308 = vld [vmem:[%s2 + $0x18] sm:$0xff]
        %311 = vst [vmem:[#allocation1] ss:$2 sm:$0xff] %v303
        %s312 = scalar_lea.vmem [#allocation1], 16
        %313 = vst [vmem:[%s312] ss:$2 sm:$0xff] %v304
        %v314 = vld.sshfl [vmem:[#allocation1] sm:$0xff pattern:$0x75316420]
        %v315 = vld.sshfl [vmem:[#allocation1 + $0x8] sm:$0xff pattern:$0x75316420]
        %v316 = vld.sshfl [vmem:[#allocation1 + $0x10] sm:$0xff pattern:$0x75316420]
        %v317 = vld.sshfl [vmem:[#allocation1 + $0x18] sm:$0xff pattern:$0x75316420]
        %vm318 = vcmask 31744
        %v320 = vsel %vm318, %v305, 0
        %v323 = vsel %vm318, %v306, 0
        %v326 = vsel %vm318, %v307, 0
        %v329 = vsel %vm318, %v308, 0
        %vm331 = vcmask 1043456
        %v332 = vsel %vm331, %v314, 0
        %v334 = vsel %vm331, %v315, 0
        %v336 = vsel %vm331, %v316, 0
        %v338 = vsel %vm331, %v317, 0
        %340 = vmatpush.msra.mxu0 0.0
        %341 = vmatpush.msra.mxu0 0.0
        %342 = vmatpush.msra.mxu0 0.0
        %343 = vmatpush.msra.mxu0 0.0
        %344 = vmatpush.msra.mxu0 0.0
        %345 = vmatpush.msra.mxu0 0.0
        %346 = vmatpush.msra.mxu0 0.0
        %347 = vmatpush.msra.mxu0 0.0
        %348 = vmatpush.msra.mxu0 0.0
        %349 = vmatpush.msra.mxu0 0.0
        %350 = vmatpush.msra.mxu0 0.0
        %351 = vmatpush.msra.mxu0 0.0
        %352 = vmatpush.msra.mxu0 0.0
        %353 = vmatpush.msra.mxu0 0.0
        %354 = vmatpush.msra.mxu0 0.0
        %355 = vmatpush.msra.mxu0 %v332
        %356 = vmatmul.f32.gmra.mxu0 %v320
        %v357 = vpop.f32.mrf.mxu0
        %v358 = vadd.f32 0.0, %v357
        %359 = vmatmul.f32.gmra.mxu0 %v323
        %v360 = vpop.f32.mrf.mxu0
        %v361 = vadd.f32 0.0, %v360
        %362 = vmatmul.f32.gmra.mxu0 %v326
        %v363 = vpop.f32.mrf.mxu0
        %v364 = vadd.f32 0.0, %v363
        %365 = vmatmul.f32.gmra.mxu0 %v329
        %v366 = vpop.f32.mrf.mxu0
        %v367 = vadd.f32 0.0, %v366
        %368 = vdwg.mxu0
        %369 = vmatpush.msra.mxu0 0.0
        %370 = vmatpush.msra.mxu0 0.0
        %371 = vmatpush.msra.mxu0 0.0
        %372 = vmatpush.msra.mxu0 0.0
        %373 = vmatpush.msra.mxu0 0.0
        %374 = vmatpush.msra.mxu0 0.0
        %375 = vmatpush.msra.mxu0 0.0
        %376 = vmatpush.msra.mxu0 0.0
        %377 = vmatpush.msra.mxu0 0.0
        %378 = vmatpush.msra.mxu0 0.0
        %379 = vmatpush.msra.mxu0 0.0
        %380 = vmatpush.msra.mxu0 0.0
        %381 = vmatpush.msra.mxu0 0.0
        %382 = vmatpush.msra.mxu0 0.0
        %383 = vmatpush.msra.mxu0 0.0
        %384 = vmatpush.msra.mxu0 %v334
        %385 = vmatmul.f32.gmra.mxu0 %v320
        %v386 = vpop.f32.mrf.mxu0
        %v387 = vadd.f32 0.0, %v386
        %388 = vmatmul.f32.gmra.mxu0 %v323
        %v389 = vpop.f32.mrf.mxu0
        %v390 = vadd.f32 0.0, %v389
        %391 = vmatmul.f32.gmra.mxu0 %v326
        %v392 = vpop.f32.mrf.mxu0
        %v393 = vadd.f32 0.0, %v392
        %394 = vmatmul.f32.gmra.mxu0 %v329
        %v395 = vpop.f32.mrf.mxu0
        %v396 = vadd.f32 0.0, %v395
        %397 = vdwg.mxu0
        %398 = vmatpush.msra.mxu0 0.0
        %399 = vmatpush.msra.mxu0 0.0
        %400 = vmatpush.msra.mxu0 0.0
        %401 = vmatpush.msra.mxu0 0.0
        %402 = vmatpush.msra.mxu0 0.0
        %403 = vmatpush.msra.mxu0 0.0
        %404 = vmatpush.msra.mxu0 0.0
        %405 = vmatpush.msra.mxu0 0.0
        %406 = vmatpush.msra.mxu0 0.0
        %407 = vmatpush.msra.mxu0 0.0
        %408 = vmatpush.msra.mxu0 0.0
        %409 = vmatpush.msra.mxu0 0.0
        %410 = vmatpush.msra.mxu0 0.0
        %411 = vmatpush.msra.mxu0 0.0
        %412 = vmatpush.msra.mxu0 0.0
        %413 = vmatpush.msra.mxu0 %v336
        %414 = vmatmul.f32.gmra.mxu0 %v320
        %v415 = vpop.f32.mrf.mxu0
        %v416 = vadd.f32 0.0, %v415
        %417 = vmatmul.f32.gmra.mxu0 %v323
        %v418 = vpop.f32.mrf.mxu0
        %v419 = vadd.f32 0.0, %v418
        %420 = vmatmul.f32.gmra.mxu0 %v326
        %v421 = vpop.f32.mrf.mxu0
        %v422 = vadd.f32 0.0, %v421
        %423 = vmatmul.f32.gmra.mxu0 %v329
        %v424 = vpop.f32.mrf.mxu0
        %v425 = vadd.f32 0.0, %v424
        %426 = vdwg.mxu0
        %427 = vmatpush.msra.mxu0 0.0
        %428 = vmatpush.msra.mxu0 0.0
        %429 = vmatpush.msra.mxu0 0.0
        %430 = vmatpush.msra.mxu0 0.0
        %431 = vmatpush.msra.mxu0 0.0
        %432 = vmatpush.msra.mxu0 0.0
        %433 = vmatpush.msra.mxu0 0.0
        %434 = vmatpush.msra.mxu0 0.0
        %435 = vmatpush.msra.mxu0 0.0
        %436 = vmatpush.msra.mxu0 0.0
        %437 = vmatpush.msra.mxu0 0.0
        %438 = vmatpush.msra.mxu0 0.0
        %439 = vmatpush.msra.mxu0 0.0
        %440 = vmatpush.msra.mxu0 0.0
        %441 = vmatpush.msra.mxu0 0.0
        %442 = vmatpush.msra.mxu0 %v338
        %443 = vmatmul.f32.gmra.mxu0 %v320
        %v444 = vpop.f32.mrf.mxu0
        %v445 = vadd.f32 0.0, %v444
        %446 = vmatmul.f32.gmra.mxu0 %v323
        %v447 = vpop.f32.mrf.mxu0
        %v448 = vadd.f32 0.0, %v447
        %449 = vmatmul.f32.gmra.mxu0 %v326
        %v450 = vpop.f32.mrf.mxu0
        %v451 = vadd.f32 0.0, %v450
        %452 = vmatmul.f32.gmra.mxu0 %v329
        %v453 = vpop.f32.mrf.mxu0
        %v454 = vadd.f32 0.0, %v453
        %455 = vdwg.mxu0
        %v456 = vld [vmem:[%s3] sm:$0xff]
        %v457 = vld [vmem:[%s3 + $0x8] sm:$0xff]
        %v458 = vld [vmem:[%s3 + $0x10] sm:$0xff]
        %v459 = vld [vmem:[%s3 + $0x18] sm:$0xff]
        %v460 = vmul.f32 %v358, 2.0
        %v461 = vmul.f32 %v387, 2.0
        %v462 = vmul.f32 %v416, 2.0
        %v463 = vmul.f32 %v445, 2.0
        %v464 = vmul.f32 %v361, 2.0
        %v465 = vmul.f32 %v390, 2.0
        %v466 = vmul.f32 %v419, 2.0
        %v467 = vmul.f32 %v448, 2.0
        %v468 = vmul.f32 %v364, 2.0
        %v469 = vmul.f32 %v393, 2.0
        %v470 = vmul.f32 %v422, 2.0
        %v471 = vmul.f32 %v451, 2.0
        %v472 = vmul.f32 %v367, 2.0
        %v473 = vmul.f32 %v396, 2.0
        %v474 = vmul.f32 %v425, 2.0
        %v475 = vmul.f32 %v454, 2.0
        %477 = vset.pattern.permute.xlu0 0
        %478 = vperm.xlu0 %477, %v456
        %v479 = vpop.permute.xlu0 %478
        %482 = vset.pattern.permute.xlu0 0
        %483 = vperm.xlu0 %482, %v457
        %v484 = vpop.permute.xlu0 %483
        %487 = vset.pattern.permute.xlu0 0
        %488 = vperm.xlu0 %487, %v458
        %v489 = vpop.permute.xlu0 %488
        %492 = vset.pattern.permute.xlu0 0
        %493 = vperm.xlu0 %492, %v459
        %v494 = vpop.permute.xlu0 %493
        %v496 = vsub.f32 %v479, %v460
        %v497 = vsub.f32 %v479, %v461
        %v498 = vsub.f32 %v479, %v462
        %v499 = vsub.f32 %v479, %v463
        %v500 = vsub.f32 %v484, %v464
        %v501 = vsub.f32 %v484, %v465
        %v502 = vsub.f32 %v484, %v466
        %v503 = vsub.f32 %v484, %v467
        %v504 = vsub.f32 %v489, %v468
        %v505 = vsub.f32 %v489, %v469
        %v506 = vsub.f32 %v489, %v470
        %v507 = vsub.f32 %v489, %v471
        %v508 = vsub.f32 %v494, %v472
        %v509 = vsub.f32 %v494, %v473
        %v510 = vsub.f32 %v494, %v474
        %v511 = vsub.f32 %v494, %v475
        %v512 = vlaneseq
        %v513 = vshrl.u32 %v512, 7
        %v514 = vadd.s32 %v513, 8
        %v515 = vadd.s32 %v513, 16
        %v516 = vadd.s32 %v513, 24
        %v517 = vmin.f32 %v496, %v500
        %v518 = vmin.f32 %v517, %v504
        %v519 = vmin.f32 %v518, %v508
        %v520 = vrot.slane %v519, 4
        %v521 = vmin.f32 %v519, %v520
        %v522 = vrot.slane %v521, 2
        %v523 = vmin.f32 %v521, %v522
        %v524 = vrot.slane %v523, 1
        %v525 = vmin.f32 %v523, %v524
        %v526 = vmin.f32 %v497, %v501
        %v527 = vmin.f32 %v526, %v505
        %v528 = vmin.f32 %v527, %v509
        %v529 = vrot.slane %v528, 4
        %v530 = vmin.f32 %v528, %v529
        %v531 = vrot.slane %v530, 2
        %v532 = vmin.f32 %v530, %v531
        %v533 = vrot.slane %v532, 1
        %v534 = vmin.f32 %v532, %v533
        %v535 = vmin.f32 %v498, %v502
        %v536 = vmin.f32 %v535, %v506
        %v537 = vmin.f32 %v536, %v510
        %v538 = vrot.slane %v537, 4
        %v539 = vmin.f32 %v537, %v538
        %v540 = vrot.slane %v539, 2
        %v541 = vmin.f32 %v539, %v540
        %v542 = vrot.slane %v541, 1
        %v543 = vmin.f32 %v541, %v542
        %v544 = vmin.f32 %v499, %v503
        %v545 = vmin.f32 %v544, %v507
        %v546 = vmin.f32 %v545, %v511
        %v547 = vrot.slane %v546, 4
        %v548 = vmin.f32 %v546, %v547
        %v549 = vrot.slane %v548, 2
        %v550 = vmin.f32 %v548, %v549
        %v551 = vrot.slane %v550, 1
        %v552 = vmin.f32 %v550, %v551
        %vm553 = vcmp.le.f32.partialorder %v496, %v525
        %vm554 = vcmp.le.f32.partialorder %v497, %v534
        %vm555 = vcmp.le.f32.partialorder %v498, %v543
        %vm556 = vcmp.le.f32.partialorder %v499, %v552
        %vm557 = vcmp.le.f32.partialorder %v500, %v525
        %vm558 = vcmp.le.f32.partialorder %v501, %v534
        %vm559 = vcmp.le.f32.partialorder %v502, %v543
        %vm560 = vcmp.le.f32.partialorder %v503, %v552
        %vm561 = vcmp.le.f32.partialorder %v504, %v525
        %vm562 = vcmp.le.f32.partialorder %v505, %v534
        %vm563 = vcmp.le.f32.partialorder %v506, %v543
        %vm564 = vcmp.le.f32.partialorder %v507, %v552
        %vm565 = vcmp.le.f32.partialorder %v508, %v525
        %vm566 = vcmp.le.f32.partialorder %v509, %v534
        %vm567 = vcmp.le.f32.partialorder %v510, %v543
        %vm568 = vcmp.le.f32.partialorder %v511, %v552
        %v569 = vcvt.s32.f32 %v513
        %v570 = vcvt.s32.f32 %v514
        %v571 = vcvt.s32.f32 %v515
        %v572 = vcvt.s32.f32 %v516
        %v573 = vsel %vm553, %v569, 32.0
        %v574 = vsel %vm554, %v569, 32.0
        %v575 = vsel %vm555, %v569, 32.0
        %v576 = vsel %vm556, %v569, 32.0
        %v577 = vsel %vm557, %v570, 32.0
        %v578 = vsel %vm558, %v570, 32.0
        %v579 = vsel %vm559, %v570, 32.0
        %v580 = vsel %vm560, %v570, 32.0
        %v581 = vsel %vm561, %v571, 32.0
        %v582 = vsel %vm562, %v571, 32.0
        %v583 = vsel %vm563, %v571, 32.0
        %v584 = vsel %vm564, %v571, 32.0
        %v585 = vsel %vm565, %v572, 32.0
        %v586 = vsel %vm566, %v572, 32.0
        %v587 = vsel %vm567, %v572, 32.0
        %v588 = vsel %vm568, %v572, 32.0
        %v589 = vmin.f32 %v573, %v577
        %v590 = vmin.f32 %v589, %v581
        %v591 = vmin.f32 %v590, %v585
        %v592 = vrot.slane %v591, 4
        %v593 = vmin.f32 %v591, %v592
        %v594 = vrot.slane %v593, 2
        %v595 = vmin.f32 %v593, %v594
        %v596 = vrot.slane %v595, 1
        %v597 = vmin.f32 %v595, %v596
        %v598 = vmin.f32 %v574, %v578
        %v599 = vmin.f32 %v598, %v582
        %v600 = vmin.f32 %v599, %v586
        %v601 = vrot.slane %v600, 4
        %v602 = vmin.f32 %v600, %v601
        %v603 = vrot.slane %v602, 2
        %v604 = vmin.f32 %v602, %v603
        %v605 = vrot.slane %v604, 1
        %v606 = vmin.f32 %v604, %v605
        %v607 = vmin.f32 %v575, %v579
        %v608 = vmin.f32 %v607, %v583
        %v609 = vmin.f32 %v608, %v587
        %v610 = vrot.slane %v609, 4
        %v611 = vmin.f32 %v609, %v610
        %v612 = vrot.slane %v611, 2
        %v613 = vmin.f32 %v611, %v612
        %v614 = vrot.slane %v613, 1
        %v615 = vmin.f32 %v613, %v614
        %v616 = vmin.f32 %v576, %v580
        %v617 = vmin.f32 %v616, %v584
        %v618 = vmin.f32 %v617, %v588
        %v619 = vrot.slane %v618, 4
        %v620 = vmin.f32 %v618, %v619
        %v621 = vrot.slane %v620, 2
        %v622 = vmin.f32 %v620, %v621
        %v623 = vrot.slane %v622, 1
        %v624 = vmin.f32 %v622, %v623
        %v625 = vcvt.f32.s32.to.zero.pseudo %v597
        %v626 = vcvt.f32.s32.to.zero.pseudo %v606
        %v627 = vcvt.f32.s32.to.zero.pseudo %v615
        %v628 = vcvt.f32.s32.to.zero.pseudo %v624
        %vm629 = vcmp.eq.s32.totalorder %v513, %v625
        %vm630 = vcmp.eq.s32.totalorder %v513, %v626
        %vm631 = vcmp.eq.s32.totalorder %v513, %v627
        %vm632 = vcmp.eq.s32.totalorder %v513, %v628
        %vm633 = vcmp.eq.s32.totalorder %v514, %v625
        %vm634 = vcmp.eq.s32.totalorder %v514, %v626
        %vm635 = vcmp.eq.s32.totalorder %v514, %v627
        %vm636 = vcmp.eq.s32.totalorder %v514, %v628
        %vm637 = vcmp.eq.s32.totalorder %v515, %v625
        %vm638 = vcmp.eq.s32.totalorder %v515, %v626
        %vm639 = vcmp.eq.s32.totalorder %v515, %v627
        %vm640 = vcmp.eq.s32.totalorder %v515, %v628
        %vm641 = vcmp.eq.s32.totalorder %v516, %v625
        %vm642 = vcmp.eq.s32.totalorder %v516, %v626
        %vm643 = vcmp.eq.s32.totalorder %v516, %v627
        %vm644 = vcmp.eq.s32.totalorder %v516, %v628
        %v645 = vsel %vm629, 1, 0
        %v646 = vsel %vm630, 1, 0
        %v647 = vsel %vm631, 1, 0
        %v648 = vsel %vm632, 1, 0
        %v649 = vsel %vm633, 1, 0
        %v650 = vsel %vm634, 1, 0
        %v651 = vsel %vm635, 1, 0
        %v652 = vsel %vm636, 1, 0
        %v653 = vsel %vm637, 1, 0
        %v654 = vsel %vm638, 1, 0
        %v655 = vsel %vm639, 1, 0
        %v656 = vsel %vm640, 1, 0
        %v657 = vsel %vm641, 1, 0
        %v658 = vsel %vm642, 1, 0
        %v659 = vsel %vm643, 1, 0
        %v660 = vsel %vm644, 1, 0
        %v661 = vcvt.s32.f32 %v645
        %v662 = vcvt.s32.f32 %v646
        %v663 = vcvt.s32.f32 %v647
        %v664 = vcvt.s32.f32 %v648
        %v665 = vcvt.s32.f32 %v649
        %v666 = vcvt.s32.f32 %v650
        %v667 = vcvt.s32.f32 %v651
        %v668 = vcvt.s32.f32 %v652
        %v669 = vcvt.s32.f32 %v653
        %v670 = vcvt.s32.f32 %v654
        %v671 = vcvt.s32.f32 %v655
        %v672 = vcvt.s32.f32 %v656
        %v673 = vcvt.s32.f32 %v657
        %v674 = vcvt.s32.f32 %v658
        %v675 = vcvt.s32.f32 %v659
        %v676 = vcvt.s32.f32 %v660
        %v677 = vld [vmem:[%s1] sm:$0xf]
        %vm678 = vcmask 261120
        %v680 = vsel %vm678, %v677, 0
        %682 = vmatpush.msra.mxu0 0.0
        %683 = vmatpush.msra.mxu0 0.0
        %684 = vmatpush.msra.mxu0 0.0
        %685 = vmatpush.msra.mxu0 0.0
        %686 = vmatpush.msra.mxu0 0.0
        %687 = vmatpush.msra.mxu0 0.0
        %688 = vmatpush.msra.mxu0 0.0
        %689 = vmatpush.msra.mxu0 0.0
        %690 = vmatpush.msra.mxu0 0.0
        %691 = vmatpush.msra.mxu0 0.0
        %692 = vmatpush.msra.mxu0 0.0
        %693 = vmatpush.msra.mxu0 0.0
        %694 = vmatpush.msra.mxu0 %v673
        %695 = vmatpush.msra.mxu0 %v669
        %696 = vmatpush.msra.mxu0 %v665
        %697 = vmatpush.msra.mxu0 %v661
        %698 = vmatmul.f32.gmra.mxu0 %v680
        %v699 = vpop.f32.mrf.mxu0
        %v700 = vadd.f32 0.0, %v699
        %701 = vdwg.mxu0
        %702 = vmatpush.msra.mxu0 0.0
        %703 = vmatpush.msra.mxu0 0.0
        %704 = vmatpush.msra.mxu0 0.0
        %705 = vmatpush.msra.mxu0 0.0
        %706 = vmatpush.msra.mxu0 0.0
        %707 = vmatpush.msra.mxu0 0.0
        %708 = vmatpush.msra.mxu0 0.0
        %709 = vmatpush.msra.mxu0 0.0
        %710 = vmatpush.msra.mxu0 0.0
        %711 = vmatpush.msra.mxu0 0.0
        %712 = vmatpush.msra.mxu0 0.0
        %713 = vmatpush.msra.mxu0 0.0
        %714 = vmatpush.msra.mxu0 %v674
        %715 = vmatpush.msra.mxu0 %v670
        %716 = vmatpush.msra.mxu0 %v666
        %717 = vmatpush.msra.mxu0 %v662
        %718 = vmatmul.f32.gmra.mxu0 %v680
        %v719 = vpop.f32.mrf.mxu0
        %v720 = vadd.f32 0.0, %v719
        %721 = vdwg.mxu0
        %722 = vmatpush.msra.mxu0 0.0
        %723 = vmatpush.msra.mxu0 0.0
        %724 = vmatpush.msra.mxu0 0.0
        %725 = vmatpush.msra.mxu0 0.0
        %726 = vmatpush.msra.mxu0 0.0
        %727 = vmatpush.msra.mxu0 0.0
        %728 = vmatpush.msra.mxu0 0.0
        %729 = vmatpush.msra.mxu0 0.0
        %730 = vmatpush.msra.mxu0 0.0
        %731 = vmatpush.msra.mxu0 0.0
        %732 = vmatpush.msra.mxu0 0.0
        %733 = vmatpush.msra.mxu0 0.0
        %734 = vmatpush.msra.mxu0 %v675
        %735 = vmatpush.msra.mxu0 %v671
        %736 = vmatpush.msra.mxu0 %v667
        %737 = vmatpush.msra.mxu0 %v663
        %738 = vmatmul.f32.gmra.mxu0 %v680
        %v739 = vpop.f32.mrf.mxu0
        %v740 = vadd.f32 0.0, %v739
        %741 = vdwg.mxu0
        %742 = vmatpush.msra.mxu0 0.0
        %743 = vmatpush.msra.mxu0 0.0
        %744 = vmatpush.msra.mxu0 0.0
        %745 = vmatpush.msra.mxu0 0.0
        %746 = vmatpush.msra.mxu0 0.0
        %747 = vmatpush.msra.mxu0 0.0
        %748 = vmatpush.msra.mxu0 0.0
        %749 = vmatpush.msra.mxu0 0.0
        %750 = vmatpush.msra.mxu0 0.0
        %751 = vmatpush.msra.mxu0 0.0
        %752 = vmatpush.msra.mxu0 0.0
        %753 = vmatpush.msra.mxu0 0.0
        %754 = vmatpush.msra.mxu0 %v676
        %755 = vmatpush.msra.mxu0 %v672
        %756 = vmatpush.msra.mxu0 %v668
        %757 = vmatpush.msra.mxu0 %v664
        %758 = vmatmul.f32.gmra.mxu0 %v680
        %v759 = vpop.f32.mrf.mxu0
        %v760 = vadd.f32 0.0, %v759
        %761 = vdwg.mxu0
        %762 = vst [vmem:[#allocation1] ss:$2 sm:$0xff] %v303
        %s763 = scalar_lea.vmem [#allocation1], 16
        %764 = vst [vmem:[%s763] ss:$2 sm:$0xff] %v304
        %v765 = vld.sshfl [vmem:[#allocation1] sm:$0xff pattern:$0x75316420]
        %v766 = vld.sshfl [vmem:[#allocation1 + $0x8] sm:$0xff pattern:$0x75316420]
        %v767 = vld.sshfl [vmem:[#allocation1 + $0x10] sm:$0xff pattern:$0x75316420]
        %v768 = vld.sshfl [vmem:[#allocation1 + $0x18] sm:$0xff pattern:$0x75316420]
        %v773 = vsub.f32 %v700, %v765
        %v774 = vsub.f32 %v720, %v766
        %v775 = vsub.f32 %v740, %v767
        %v776 = vsub.f32 %v760, %v768
        %v777 = vlaneseq
        %v778 = vand.u32 %v777, 127
        %v779 = vadd.s32 %v778, 128
        %v780 = vadd.s32 %v778, 256
        %v781 = vadd.s32 %v778, 384
        %s782 = smul.u32 %s29, 512
        %v783 = vstv %s782
        %v784 = vadd.s32 %v778, %v783
        %v785 = vadd.s32 %v779, %v783
        %v786 = vadd.s32 %v780, %v783
        %v787 = vadd.s32 %v781, %v783
        %vm788 = vcmp.lt.s32.totalorder %v784, 512
        %vm789 = vcmp.lt.s32.totalorder %v785, 512
        %vm790 = vcmp.lt.s32.totalorder %v786, 512
        %vm791 = vcmp.lt.s32.totalorder %v787, 512
        %v792 = vmul.f32 %v773, %v773
        %v793 = vmul.f32 %v774, %v774
        %v794 = vmul.f32 %v775, %v775
        %v795 = vmul.f32 %v776, %v776
        %v796 = vsel %vm788, 1, 0
        %v797 = vsel %vm789, 1, 0
        %v798 = vsel %vm790, 1, 0
        %v799 = vsel %vm791, 1, 0
        %vm800 = vcmp.eq.s32.totalorder %v796, 1
        %vm801 = vcmp.eq.s32.totalorder %v797, 1
        %vm802 = vcmp.eq.s32.totalorder %v798, 1
        %vm803 = vcmp.eq.s32.totalorder %v799, 1
        %v804 = vsel %vm800, %v792, 0.0
        %v805 = vsel %vm801, %v793, 0.0
        %v806 = vsel %vm802, %v794, 0.0
        %v807 = vsel %vm803, %v795, 0.0
        %v808 = vsel %vm331, %v804, 0.0
        %v809 = vsel %vm331, %v805, 0.0
        %v810 = vadd.f32 %v808, %v809
        %v811 = vsel %vm331, %v806, 0.0
        %v812 = vadd.f32 %v810, %v811
        %v813 = vsel %vm331, %v807, 0.0
        %v814 = vadd.f32 %v812, %v813
        %815 = vadd.xlane.f32.xlu0 %v814
        %v816 = vpop.xlane.xlu0 %815
        %v817 = vrot.slane %v816, 4
        %v818 = vadd.f32 %v816, %v817
        %v819 = vrot.slane %v818, 2
        %v820 = vadd.f32 %v818, %v819
        %v821 = vrot.slane %v820, 1
        %v822 = vadd.f32 %v820, %v821
        %s823 = vtos %v822
        %v828 = vrot.slane %v774, 4
        %v829 = vrot.slane %v776, 4
        %v830 = vsel %vm331, %v773, %v828
        %v831 = vsel %vm331, %v775, %v829
        %v834 = vadd.f32 %v303, %v830
        %v835 = vadd.f32 %v304, %v831
        %836 = vst [vmem:[%s277] sm:$0xff] %v834
        %837 = vst [vmem:[%s277 + $0x8] sm:$0xff] %v835
        %v838 = vrot.slane %v626, 7
        %v839 = vrot.slane %v627, 6
        %v840 = vrot.slane %v628, 5
        %vm841 = vcmask 1040384
        %v842 = vsel %vm841, %v625, %v838
        %vm843 = vcmask 1042434
        %v844 = vsel %vm843, %v839, %v840
        %vm845 = vcmask 1041408
        %v846 = vsel %vm845, %v842, %v844
        %v847 = vlaneseq
        %vm848 = vcmp.ge.s32.totalorder %v847, 0
        %vm849 = vcmp.lt.s32.totalorder %v847, 512
        %vm850 = vmand %vm848, %vm849
        %851 = vst.msk [vmem:[%s284] sm:$0xf] %vm850, %v846
        %v852 = vstv %s823
        %853 = vst [vmem:[%s290] sm:$0x1] %v852
        %s854 = sand.u32 %s137, 1
        %s855 = scalar_lea.sflag [#allocation3], %s854
        %s856 = sand.u32 %s137, 1
        %s857 = smul.addr %s856, 16
        %s858 = scalar_lea.vmem [#allocation2], %s857
        %s859 = sand.u32 %s24, 1
        %s860 = scalar_lea.sflag [#allocation5], %s859
        %s861 = sand.u32 %s165, 1
        %s862 = smul.addr %s861, 4
        %s863 = scalar_lea.vmem [#allocation4], %s862
        %s864 = sand.u32 %s24, 1
        %s865 = scalar_lea.sflag [#allocation5], %s864
        %s866 = sand.u32 %s193, 1
        %s867 = scalar_lea.vmem [#allocation6], %s866
        // Predicated region
        $region37: #{tpu_custom_call.1} parent=35 // pred_check
          %p868 = pneg %p147
        $region38: #{tpu_custom_call.1} parent=35 // pred_check_branch
          %870 = sbr.rel (%p868) target = $region40
        $region39: #{tpu_custom_call.1} parent=35 // pred_region
          %s871 = smul.u32 4, %s29
          %873 = vsyncadd %s855, 0
          %s874 = smul.addr %s28, 4
          %s875 = sadd.s32 %s871, %s874
          %s876 = smul.addr %s875, 4
          %s877 = scalar_lea.hbm %s4, %s876
          %s879 = sshll.u32 %s858, 4
          %s880 = int_to_ptr.vmem [resolvable:$true] %s879
          %s881 = sshll.u32 %s877, 4
          %s882 = int_to_ptr.hbm [resolvable:$true] %s881
          %884 = dma.vmem_to_hbm [thread:$0]  %s880, 256, %s882, %s855
        $region40: #{tpu_custom_call.1} parent=35 // pred_fallthru
          _
        // Predicated region
        $region41: #{tpu_custom_call.1} parent=35 // pred_check
          %p885 = pneg %p175
        $region42: #{tpu_custom_call.1} parent=35 // pred_check_branch
          %887 = sbr.rel (%p885) target = $region44
        $region43: #{tpu_custom_call.1} parent=35 // pred_region
          %s888 = smul.u32 4, %s29
          %890 = vsyncadd %s860, 0
          %s891 = smul.addr %s28, 4
          %s892 = sadd.s32 %s888, %s891
          %s893 = scalar_lea.hbm %s5, %s892
          %s895 = sshll.u32 %s863, 4
          %s896 = int_to_ptr.vmem [resolvable:$true] %s895
          %s897 = sshll.u32 %s893, 4
          %s898 = int_to_ptr.hbm [resolvable:$true] %s897
          %900 = dma.vmem_to_hbm [thread:$0]  %s896, 64, %s898, %s860
        $region44: #{tpu_custom_call.1} parent=35 // pred_fallthru
          _
        // Predicated region
        $region45: #{tpu_custom_call.1} parent=35 // pred_check
          %p901 = pneg %p203
        $region46: #{tpu_custom_call.1} parent=35 // pred_check_branch
          %903 = sbr.rel (%p901) target = $region48
        $region47: #{tpu_custom_call.1} parent=35 // pred_region
          %905 = vsyncadd %s865, 0
          %s906 = sadd.s32 %s29, %s28
          %s907 = scalar_lea.hbm %s6, %s906
          %s909 = sshll.u32 %s867, 4
          %s910 = int_to_ptr.vmem [resolvable:$true] %s909
          %s911 = sshll.u32 %s907, 4
          %s912 = int_to_ptr.hbm [resolvable:$true] %s911
          %914 = dma.vmem_to_hbm [thread:$0]  %s910, 16, %s912, %s865
        $region48: #{tpu_custom_call.1} parent=35 // pred_fallthru
          _
      $region36: #{tpu_custom_call.1} parent=5 // pred_fallthru
        _
      %p915 = scmp.le.s32.totalorder 2, %s19
      // Predicated region
      $region49: #{tpu_custom_call.1} parent=5 // pred_check
        %p916 = pneg %p915
      $region50: #{tpu_custom_call.1} parent=5 // pred_check_branch
        %918 = sbr.rel (%p916) target = $region52
      $region51: #{tpu_custom_call.1} parent=5 // pred_region
        %s919 = ssub.s32 %s19, 2
        // Predicated region
        $region53: #{tpu_custom_call.1} parent=51 // pred_check
          %p920 = pneg %p153
        $region54: #{tpu_custom_call.1} parent=51 // pred_check_branch
          %922 = sbr.rel (%p920) target = $region56
        $region55: #{tpu_custom_call.1} parent=51 // pred_region
          %s923 = sand.u32 %s138, 1
          %s924 = scalar_lea.sflag [#allocation3], %s923
          %s925 = sand.u32 %s138, 1
          %s926 = smul.addr %s925, 16
          %s927 = scalar_lea.vmem [#allocation2], %s926
          %929 = dma.done %s924, 256
        $region56: #{tpu_custom_call.1} parent=51 // pred_fallthru
          _
        // Predicated region
        $region57: #{tpu_custom_call.1} parent=51 // pred_check
          %p930 = pneg %p181
        $region58: #{tpu_custom_call.1} parent=51 // pred_check_branch
          %932 = sbr.rel (%p930) target = $region60
        $region59: #{tpu_custom_call.1} parent=51 // pred_region
          %s933 = sand.u32 %s25, 1
          %s934 = scalar_lea.sflag [#allocation5], %s933
          %s935 = sand.u32 %s166, 1
          %s936 = smul.addr %s935, 4
          %s937 = scalar_lea.vmem [#allocation4], %s936
          %939 = dma.done %s934, 64
        $region60: #{tpu_custom_call.1} parent=51 // pred_fallthru
          _
        // Predicated region
        $region61: #{tpu_custom_call.1} parent=51 // pred_check
          %p940 = pneg %p209
        $region62: #{tpu_custom_call.1} parent=51 // pred_check_branch
          %942 = sbr.rel (%p940) target = $region64
        $region63: #{tpu_custom_call.1} parent=51 // pred_region
          %s943 = sand.u32 %s25, 1
          %s944 = scalar_lea.sflag [#allocation5], %s943
          %s945 = sand.u32 %s194, 1
          %s946 = scalar_lea.vmem [#allocation6], %s945
          %948 = dma.done %s944, 16
        $region64: #{tpu_custom_call.1} parent=51 // pred_fallthru
          _
      $region52: #{tpu_custom_call.1} parent=5 // pred_fallthru
        _
    $region6: #{tpu_custom_call.1} parent=1 // loop_footer
      %s23 = sadd.s32 1, %s19
    $region7: #{tpu_custom_call.1} parent=1 // loop_footer_branch
      %18 = sbr.rel target = $region3
    $region8: #{tpu_custom_call.1} parent=1 // loop_exit
      _
    %949 = vsyncpa [#allocation3], 1
    %s950 = scalar_lea.sflag [#allocation3], 1
    %951 = vsyncpa %s950, 1
    %952 = vsyncpa [#allocation5], 1
    %s953 = scalar_lea.sflag [#allocation5], 1
    %954 = vsyncpa %s953, 1

</llo_original>
